<compile_context>
chip_gen: v5e
topology: v5e:2x2
jax: 0.10.0
libtpu: 0.0.40
codegen_flags: <defaults>
</compile_context>

<pallas_src>
import functools

import jax
import jax.numpy as jnp
from jax import lax
from jax.experimental import pallas as pl
from jax.experimental.pallas import tpu as pltpu

_LANES = 128


def _dice_bce_kernel(x_ref, t_ref, acc_ref, *, rows_total, block_rows,
                     mask_last, binary_target):
    k = pl.program_id(1)
    last = pl.num_programs(1) - 1

    @pl.when(k == 0)
    def _():
        acc_ref[...] = jnp.zeros_like(acc_ref)

    def accumulate(x, t):
        # x, t: (bb, block_rows, 128) float32; reduce per-sample over axis=1.
        inter = jnp.sum(x * t, axis=1, keepdims=True)                 # (bb,1,128)
        if binary_target:
            union = jnp.sum(x * x + t, axis=1, keepdims=True)         # t^2 == t
            # One log/element: log(p_correct), torch-style clamp at -100.
            p_correct = jnp.where(t > 0.5, x, 1.0 - x)
            bce_elem = -jnp.maximum(jnp.log(p_correct), -100.0)
        else:
            union = jnp.sum(x * x + t * t, axis=1, keepdims=True)
            # Clamp logs BEFORE the multiply (matches torch.nn.BCELoss), so
            # zero-padded elements contribute exactly 0.
            log_x = jnp.maximum(jnp.log(x), -100.0)
            log_1mx = jnp.maximum(jnp.log1p(-x), -100.0)
            bce_elem = -(t * log_x + (1.0 - t) * log_1mx)
        bce = jnp.sum(bce_elem, axis=1, keepdims=True)                # (bb,1,128)
        pad = jnp.zeros((x.shape[0], 5, x.shape[-1]), jnp.float32)
        # One full (bb, 8, 128) tile update -> single unmasked accumulator store.
        acc_ref[...] += jnp.concatenate([inter, union, bce, pad], axis=1)

    if mask_last:
        # Steady state: no masking work at all.
        @pl.when(k != last)
        def _():
            accumulate(x_ref[...].astype(jnp.float32),
                       t_ref[...].astype(jnp.float32))

        # Final chunk only: zero the out-of-range tail rows (neutral for all
        # three sums).
        @pl.when(k == last)
        def _():
            x = x_ref[...].astype(jnp.float32)
            t = t_ref[...].astype(jnp.float32)
            row_ids = lax.broadcasted_iota(jnp.int32, x.shape, 1)
            valid = row_ids < (rows_total - k * block_rows)
            accumulate(jnp.where(valid, x, 0.0), jnp.where(valid, t, 0.0))
    else:
        accumulate(x_ref[...].astype(jnp.float32),
                   t_ref[...].astype(jnp.float32))


def dice_and_bce_loss(inp, tgt, *, assume_binary_target=False,
                      max_block_bytes=None):
    """Equivalent of Dice_and_BCELoss().forward(input, target).

    `tgt` may be passed as bf16/int8 (exact for 0/1 masks) to cut HBM traffic;
    everything is cast to f32 in-kernel.
    """
    assert inp.shape == tgt.shape
    n = inp.shape[0]
    f = 1
    for d in inp.shape[1:]:
        f *= int(d)

    x = inp.reshape(n, f)
    t = tgt.reshape(n, f)

    # Pad the feature axis only to the next multiple of 128 (<=127 zeros per
    # sample; zeros are neutral for all three sums).
    rows = pl.cdiv(f, _LANES)
    f128 = rows * _LANES
    if f128 != f:
        x = jnp.pad(x, ((0, 0), (0, f128 - f)))
        t = jnp.pad(t, ((0, 0), (0, f128 - f)))
    x = x.reshape(n, rows, _LANES)
    t = t.reshape(n, rows, _LANES)

    # Generation-aware block sizing: big streaming blocks, but capped so the
    # double-buffered footprint fits v7x's 64 MiB VMEM as well as v5e/v6e's 128.
    try:
        vmem_bytes = int(pltpu.get_tpu_info().vmem_capacity_bytes)
    except Exception:
        vmem_bytes = 64 * 1024 * 1024  # assume the smallest (v7x per-TC) VMEM
    if max_block_bytes is None:
        max_block_bytes = max(vmem_bytes // 16, 1 << 20)  # 8 MiB v5e/v6e, 4 MiB v7x
    vmem_limit_bytes = int((vmem_bytes * 3) // 4)

    bytes_per_row = _LANES * 4  # budget in f32 (in-kernel compute dtype)
    # Multiple of 32 so bf16/int8 inputs tile cleanly when the block is partial.
    max_block_rows = max(32, (max_block_bytes // bytes_per_row) // 32 * 32)

    if rows <= max_block_rows:
        block_rows = rows
        g = 1
    else:
        block_rows = max_block_rows
        g = pl.cdiv(rows, block_rows)
    mask_last = (rows % block_rows) != 0

    # Pack multiple samples per grid step when a single sample's feature block
    # is tiny (otherwise the ~0.35 us/step overhead dominates the DMA).
    sample_block_bytes = block_rows * bytes_per_row
    target_step_bytes = 512 * 1024
    if g == 1 and n > 1 and sample_block_bytes < target_step_bytes:
        bb = min(n, max(1, target_step_bytes // sample_block_bytes))
        bb = min(bb, max(1, max_block_bytes // sample_block_bytes))
    else:
        bb = 1

    nb = pl.cdiv(n, bb)
    n_pad = nb * bb
    if n_pad != n:
        # Zero samples are neutral for all three partial sums; sliced off below.
        x = jnp.pad(x, ((0, n_pad - n), (0, 0), (0, 0)))
        t = jnp.pad(t, ((0, n_pad - n), (0, 0), (0, 0)))

    kernel = functools.partial(
        _dice_bce_kernel,
        rows_total=rows,
        block_rows=block_rows,
        mask_last=mask_last,
        binary_target=assume_binary_target,
    )

    acc = pl.pallas_call(
        kernel,
        out_shape=jax.ShapeDtypeStruct((n_pad, 8, _LANES), jnp.float32),
        grid_spec=pltpu.PrefetchScalarGridSpec(
            num_scalar_prefetch=0,
            grid=(nb, g),
            in_specs=[
                pl.BlockSpec((bb, block_rows, _LANES), lambda i, k: (i, k, 0)),
                pl.BlockSpec((bb, block_rows, _LANES), lambda i, k: (i, k, 0)),
            ],
            out_specs=pl.BlockSpec((bb, 8, _LANES), lambda i, k: (i, 0, 0)),
        ),
        compiler_params=pltpu.CompilerParams(
            dimension_semantics=("parallel", "arbitrary"),
            vmem_limit_bytes=vmem_limit_bytes,
        ),
    )(x, t)

    # Tiny O(N*128) combine in plain JAX.
    acc = acc[:n]
    inter = jnp.sum(acc[:, 0, :], axis=-1)
    union = jnp.sum(acc[:, 1, :], axis=-1)
    bce_total = jnp.sum(acc[:, 2, :])

    smooth = 1.0
    dice = jnp.mean(1.0 - (2.0 * inter + smooth) / (union + smooth))
    bce = bce_total / (n * f)  # mean over all (unpadded) elements
    return dice + bce


def _reference(inp, tgt):
    """Pure-JAX reference mirroring the PyTorch module."""
    n = inp.shape[0]
    x = inp.reshape(n, -1).astype(jnp.float32)
    t = tgt.reshape(n, -1).astype(jnp.float32)
    intersect = jnp.sum(x * t, axis=1)
    union = jnp.sum(x * x, axis=1) + jnp.sum(t * t, axis=1)
    dice = jnp.mean(1.0 - (2.0 * intersect + 1.0) / (union + 1.0))
    log_x = jnp.maximum(jnp.log(x), -100.0)
    log_1mx = jnp.maximum(jnp.log1p(-x), -100.0)
    bce = jnp.mean(-(t * log_x + (1.0 - t) * log_1mx))
    return dice + bce


if __name__ == "__main__":
    key = jax.random.PRNGKey(0)
    k1, k2, k3, k4 = jax.random.split(key, 4)

    # Test 1: module-sized input (N, C, H, W) = (2, 4, 16, 16).
    logits = jax.random.normal(k1, (2, 4, 16, 16), dtype=jnp.float32)
    inp = jax.nn.sigmoid(logits)                       # probabilities in (0, 1)
    tgt = (jax.random.uniform(k2, (2, 4, 16, 16)) > 0.5).astype(jnp.float32)

    loss = jax.block_until_ready(dice_and_bce_loss(inp, tgt))
    ref = jax.block_until_ready(_reference(inp, tgt))
    assert jnp.allclose(loss, ref, rtol=1e-5, atol=1e-5), (loss, ref)

    # Test 2: binary-target fast path (one log / element) on the same data.
    loss_bin = jax.block_until_ready(
        dice_and_bce_loss(inp, tgt, assume_binary_target=True))
    assert jnp.allclose(loss_bin, ref, rtol=1e-4, atol=1e-4), (loss_bin, ref)

    # Test 3: exercise the multi-chunk reduction, the pl.when-gated tail mask,
    # and a narrowed (bf16) target by forcing a tiny block cap.
    logits2 = jax.random.normal(k3, (2, 4, 80, 16), dtype=jnp.float32)
    inp2 = jax.nn.sigmoid(logits2)
    tgt2 = (jax.random.uniform(k4, (2, 4, 80, 16)) > 0.5).astype(jnp.float32)
    loss2 = jax.block_until_ready(
        dice_and_bce_loss(inp2, tgt2.astype(jnp.bfloat16),
                          max_block_bytes=16 * 1024))
    ref2 = jax.block_until_ready(_reference(inp2, tgt2))
    assert jnp.allclose(loss2, ref2, rtol=1e-5, atol=1e-5), (loss2, ref2)

    print("KERNEL_OK")
</pallas_src>

<mosaic_0001>
module attributes {stable_mosaic.version = 11 : i64} {
  func.func @_dice_bce_kernel(%arg0: i32, %arg1: i32, %arg2: memref<2x8x128xf32, #tpu.memory_space<vmem>>, %arg3: memref<2x8x128xf32, #tpu.memory_space<vmem>>, %arg4: memref<2x8x128xf32, #tpu.memory_space<vmem>>) attributes {dimension_semantics = [#tpu.dimension_semantics<parallel>, #tpu.dimension_semantics<arbitrary>], iteration_bounds = array<i64: 1, 1>, scalar_prefetch = 0 : i64, scratch_operands = 0 : i64, tpu.core_type = #tpu.core_type<tc>, window_params = [{transform_indices = @transform_0, window_bounds = array<i64: 2, 8, 128>}, {transform_indices = @transform_1, window_bounds = array<i64: 2, 8, 128>}, {transform_indices = @transform_2, window_bounds = array<i64: 2, 8, 128>}]} {
    %c0_i32 = arith.constant 0 : i32
    %0 = arith.cmpi eq, %arg1, %c0_i32 : i32
    %1 = arith.extui %0 : i1 to i32
    %c0_i32_0 = arith.constant 0 : i32
    %2 = arith.cmpi ne, %1, %c0_i32_0 : i32
    scf.if %2 {
      %cst_20 = arith.constant 0.000000e+00 : f32
      %35 = vector.broadcast %cst_20 : f32 to vector<2x8x128xf32>
      %c0_21 = arith.constant 0 : index
      %c0_22 = arith.constant 0 : index
      %c0_23 = arith.constant 0 : index
      %36 = vector.load %arg4[%c0_21, %c0_22, %c0_23] : memref<2x8x128xf32, #tpu.memory_space<vmem>>, vector<2x8x128xf32>
      tpu.vector_store %arg4[%c0_21, %c0_22, %c0_23], %35 {strides = array<i32>} : memref<2x8x128xf32, #tpu.memory_space<vmem>>, vector<2x8x128xf32>,
    } else {
    }
    %c0 = arith.constant 0 : index
    %c0_1 = arith.constant 0 : index
    %c0_2 = arith.constant 0 : index
    %3 = vector.load %arg2[%c0, %c0_1, %c0_2] : memref<2x8x128xf32, #tpu.memory_space<vmem>>, vector<2x8x128xf32>
    %c0_3 = arith.constant 0 : index
    %c0_4 = arith.constant 0 : index
    %c0_5 = arith.constant 0 : index
    %4 = vector.load %arg3[%c0_3, %c0_4, %c0_5] : memref<2x8x128xf32, #tpu.memory_space<vmem>>, vector<2x8x128xf32>
    %5 = arith.mulf %3, %4 : vector<2x8x128xf32>
    %cst = arith.constant dense<0.000000e+00> : vector<2x128xf32>
    %6 = vector.multi_reduction <add>, %5, %cst [1] : vector<2x8x128xf32> to vector<2x128xf32>
    %7 = vector.shape_cast %6 : vector<2x128xf32> to vector<2x1x128xf32>
    %8 = arith.mulf %3, %3 : vector<2x8x128xf32>
    %9 = arith.mulf %4, %4 : vector<2x8x128xf32>
    %10 = arith.addf %8, %9 : vector<2x8x128xf32>
    %cst_6 = arith.constant dense<0.000000e+00> : vector<2x128xf32>
    %11 = vector.multi_reduction <add>, %10, %cst_6 [1] : vector<2x8x128xf32> to vector<2x128xf32>
    %12 = vector.shape_cast %11 : vector<2x128xf32> to vector<2x1x128xf32>
    %13 = math.log %3 : vector<2x8x128xf32>
    %cst_7 = arith.constant -1.000000e+02 : f32
    %14 = vector.broadcast %cst_7 : f32 to vector<2x8x128xf32>
    %15 = arith.maximumf %13, %14 : vector<2x8x128xf32>
    %cst_8 = arith.constant 0.000000e+00 : f32
    %16 = vector.broadcast %cst_8 : f32 to vector<2x8x128xf32>
    %17 = arith.subf %16, %3 : vector<2x8x128xf32>
    %18 = math.log1p %17 : vector<2x8x128xf32>
    %cst_9 = arith.constant -1.000000e+02 : f32
    %19 = vector.broadcast %cst_9 : f32 to vector<2x8x128xf32>
    %20 = arith.maximumf %18, %19 : vector<2x8x128xf32>
    %21 = arith.mulf %4, %15 : vector<2x8x128xf32>
    %cst_10 = arith.constant 1.000000e+00 : f32
    %22 = vector.broadcast %cst_10 : f32 to vector<2x8x128xf32>
    %23 = arith.subf %22, %4 : vector<2x8x128xf32>
    %24 = arith.mulf %23, %20 : vector<2x8x128xf32>
    %25 = arith.addf %21, %24 : vector<2x8x128xf32>
    %cst_11 = arith.constant 0.000000e+00 : f32
    %26 = vector.broadcast %cst_11 : f32 to vector<2x8x128xf32>
    %27 = arith.subf %26, %25 : vector<2x8x128xf32>
    %cst_12 = arith.constant dense<0.000000e+00> : vector<2x128xf32>
    %28 = vector.multi_reduction <add>, %27, %cst_12 [1] : vector<2x8x128xf32> to vector<2x128xf32>
    %29 = vector.shape_cast %28 : vector<2x128xf32> to vector<2x1x128xf32>
    %cst_13 = arith.constant 0.000000e+00 : f32
    %30 = vector.broadcast %cst_13 : f32 to vector<2x5x128xf32>
    %c0_14 = arith.constant 0 : index
    %c0_15 = arith.constant 0 : index
    %c0_16 = arith.constant 0 : index
    %31 = vector.load %arg4[%c0_14, %c0_15, %c0_16] : memref<2x8x128xf32, #tpu.memory_space<vmem>>, vector<2x8x128xf32>
    %32 = tpu.concatenate %7, %12, %29, %30 in 1 : vector<2x1x128xf32>, vector<2x1x128xf32>, vector<2x1x128xf32>, vector<2x5x128xf32> -> vector<2x8x128xf32>
    %33 = arith.addf %31, %32 : vector<2x8x128xf32>
    %c0_17 = arith.constant 0 : index
    %c0_18 = arith.constant 0 : index
    %c0_19 = arith.constant 0 : index
    %34 = vector.load %arg4[%c0_17, %c0_18, %c0_19] : memref<2x8x128xf32, #tpu.memory_space<vmem>>, vector<2x8x128xf32>
    tpu.vector_store %arg4[%c0_17, %c0_18, %c0_19], %33 {strides = array<i32>} : memref<2x8x128xf32, #tpu.memory_space<vmem>>, vector<2x8x128xf32>,
    return
  }
  func.func @transform_0(%arg0: i32, %arg1: i32) -> (i32, i32, i32) {
    %c0_i32 = arith.constant 0 : i32
    %c0_i32_0 = arith.constant 0 : i32
    return %arg0, %arg1, %c0_i32 : i32, i32, i32
  }
  func.func @transform_1(%arg0: i32, %arg1: i32) -> (i32, i32, i32) {
    %c0_i32 = arith.constant 0 : i32
    %c0_i32_0 = arith.constant 0 : i32
    return %arg0, %arg1, %c0_i32 : i32, i32, i32
  }
  func.func @transform_2(%arg0: i32, %arg1: i32) -> (i32, i32, i32) {
    %c0_i32 = arith.constant 0 : i32
    %c0_i32_0 = arith.constant 0 : i32
    %c0_i32_1 = arith.constant 0 : i32
    return %arg0, %c0_i32, %c0_i32_0 : i32, i32, i32
  }
}

</mosaic_0001>

<llo_original>
// kernel: tpu_custom_call.1
$region0: #{tpu_custom_call.1}
  #allocation0 [shape = 'u32[]', space=smem, size = 0x4, offset = 0x4, fixed_abs, tag = 'smem constant byte address 0x4 - core index']
  #allocation1 [shape = 'u32[72,128]{1,0:T(1,128)}', space=vmem, size = 0x9000, scoped, tag = 'internal scratch']
  %s0 = inlined_call_operand.hbm [shape: f32[2,8,128], index: 0, kind: input, shape index: {}]
  %s1 = inlined_call_operand.hbm [shape: f32[2,8,128], index: 1, kind: input, shape index: {}]
  %s2 = inlined_call_operand.hbm [shape: f32[2,8,128], index: 2, kind: output, shape index: {}]
  %s3 = sld [smem:[#allocation0]]
  $region30: #{tpu_custom_call.1} parent=0
    _
  %s5 = ssub.s32 1, %s3
  %s6 = scalar_select 0, %s5, %s3
  $region1: #{tpu_custom_call.1} parent=0
    #allocation2 [shape = 'u8[8192]{0}', space=vmem, size = 0x2000, scoped, tag = 'input window, operand 0, single buffered']
    #allocation3 [shape = 's32[1]{0}', space=sflag, size = 0x4, scoped, tag = 'scoped memory for tpu_custom_call.1']
    #allocation4 [shape = 's32[1]{0}', space=sflag, size = 0x4, scoped, tag = 'scoped memory for tpu_custom_call.1']
    #allocation5 [shape = 'u8[8192]{0}', space=vmem, size = 0x2000, scoped, tag = 'input window, operand 1, single buffered']
    #allocation6 [shape = 's32[1]{0}', space=sflag, size = 0x4, scoped, tag = 'scoped memory for tpu_custom_call.1']
    #allocation7 [shape = 'u8[8192]{0}', space=vmem, size = 0x2000, scoped, tag = 'output window, operand 0, single buffered']
    %7 = vsyncpa [#allocation3], 0
    %8 = vsyncpa [#allocation6], 0
    %9 = vsyncpa [#allocation4], 0
    // Predicated region
    $region2: #{tpu_custom_call.1} parent=1 // pred_check
      _
    $region3: #{tpu_custom_call.1} parent=1 // pred_check_branch
      %11 = sbr.rel (0) target = $region5
    $region4: #{tpu_custom_call.1} parent=1 // pred_region
      %13 = vsyncadd [#allocation3], 0
      %s14 = sshll.u32 %s0, 4
      %s15 = int_to_ptr.hbm [resolvable:$true] %s14
      %s16 = sshll.u32 [#allocation2], 4
      %s17 = int_to_ptr.vmem [resolvable:$true] %s16
      %22 = dma.hbm_to_vmem [thread:$0]  %s15, 256, %s17, [#allocation3], 128, 128, 8
    $region5: #{tpu_custom_call.1} parent=1 // pred_fallthru
      _
    // Predicated region
    $region6: #{tpu_custom_call.1} parent=1 // pred_check
      _
    $region7: #{tpu_custom_call.1} parent=1 // pred_check_branch
      %24 = sbr.rel (0) target = $region9
    $region8: #{tpu_custom_call.1} parent=1 // pred_region
      %26 = vsyncadd [#allocation6], 0
      %s27 = sshll.u32 %s1, 4
      %s28 = int_to_ptr.hbm [resolvable:$true] %s27
      %s29 = sshll.u32 [#allocation5], 4
      %s30 = int_to_ptr.vmem [resolvable:$true] %s29
      %35 = dma.hbm_to_vmem [thread:$0]  %s28, 256, %s30, [#allocation6], 128, 128, 8
    $region9: #{tpu_custom_call.1} parent=1 // pred_fallthru
      _
    // Predicated region
    $region10: #{tpu_custom_call.1} parent=1 // pred_check
      _
    $region11: #{tpu_custom_call.1} parent=1 // pred_check_branch
      %37 = sbr.rel (0) target = $region13
    $region12: #{tpu_custom_call.1} parent=1 // pred_region
      %39 = dma.done [#allocation3], 256
    $region13: #{tpu_custom_call.1} parent=1 // pred_fallthru
      _
    // Predicated region
    $region14: #{tpu_custom_call.1} parent=1 // pred_check
      _
    $region15: #{tpu_custom_call.1} parent=1 // pred_check_branch
      %41 = sbr.rel (0) target = $region17
    $region16: #{tpu_custom_call.1} parent=1 // pred_region
      %43 = dma.done [#allocation6], 256
    $region17: #{tpu_custom_call.1} parent=1 // pred_fallthru
      _
    %p44 = scmp.eq.s32.totalorder 0, 0
    // Predicated region
    $region18: #{tpu_custom_call.1} parent=1 // pred_check
      %p45 = pneg %p44
    $region19: #{tpu_custom_call.1} parent=1 // pred_check_branch
      %47 = sbr.rel (%p45) target = $region21
    $region20: #{tpu_custom_call.1} parent=1 // pred_region
      %48 = vst [vmem:[#allocation7] sm:$0xff] 0.0
      %49 = vst [vmem:[#allocation7 + $0x8] sm:$0xff] 0.0
    $region21: #{tpu_custom_call.1} parent=1 // pred_fallthru
      _
    %v50 = vld [vmem:[#allocation2] sm:$0xff]
    %v51 = vld [vmem:[#allocation2 + $0x8] sm:$0xff]
    %v52 = vld [vmem:[#allocation5] sm:$0xff]
    %v53 = vld [vmem:[#allocation5 + $0x8] sm:$0xff]
    %v54 = vmul.f32 %v50, %v52
    %v55 = vmul.f32 %v51, %v53
    %v56 = vrot.slane %v54, 4
    %v57 = vadd.f32 %v54, %v56
    %v58 = vrot.slane %v57, 2
    %v59 = vadd.f32 %v57, %v58
    %v60 = vrot.slane %v59, 1
    %v61 = vadd.f32 %v59, %v60
    %v62 = vrot.slane %v55, 4
    %v63 = vadd.f32 %v55, %v62
    %v64 = vrot.slane %v63, 2
    %v65 = vadd.f32 %v63, %v64
    %v66 = vrot.slane %v65, 1
    %v67 = vadd.f32 %v65, %v66
    %v68 = vmul.f32 %v50, %v50
    %v69 = vmul.f32 %v51, %v51
    %v70 = vmul.f32 %v52, %v52
    %v71 = vmul.f32 %v53, %v53
    %v72 = vadd.f32 %v68, %v70
    %v73 = vadd.f32 %v69, %v71
    %v74 = vrot.slane %v72, 4
    %v75 = vadd.f32 %v72, %v74
    %v76 = vrot.slane %v75, 2
    %v77 = vadd.f32 %v75, %v76
    %v78 = vrot.slane %v77, 1
    %v79 = vadd.f32 %v77, %v78
    %v80 = vrot.slane %v73, 4
    %v81 = vadd.f32 %v73, %v80
    %v82 = vrot.slane %v81, 2
    %v83 = vadd.f32 %v81, %v82
    %v84 = vrot.slane %v83, 1
    %v85 = vadd.f32 %v83, %v84
    %v86 = vlog2.pop %v50
    %v87 = vmul.f32 %v86, 0.6931472
    %v88 = vlog2.pop %v51
    %v89 = vmul.f32 %v88, 0.6931472
    %v90 = vmax.f32 %v87, -100.0
    %v91 = vmax.f32 %v89, -100.0
    %v92 = vsub.f32 0.0, %v50
    %v93 = vsub.f32 0.0, %v51
    %v94 = vadd.f32 %v92, 1.0
    %v95 = vlog2.pop %v94
    %v96 = vmul.f32 %v95, 0.6931472
    %v97 = vmul.f32 -0.5, %v92
    %v98 = vadd.f32 %v97, 1.0
    %v99 = vmul.f32 %v98, %v92
    %v100 = vand.u32 2147483647, %v92
    %vm101 = vcmp.lt.f32.partialorder %v100, 0.0004427343
    %v102 = vsel %vm101, %v99, %v96
    %v103 = vadd.f32 %v93, 1.0
    %v104 = vlog2.pop %v103
    %v105 = vmul.f32 %v104, 0.6931472
    %v106 = vmul.f32 -0.5, %v93
    %v107 = vadd.f32 %v106, 1.0
    %v108 = vmul.f32 %v107, %v93
    %v109 = vand.u32 2147483647, %v93
    %vm110 = vcmp.lt.f32.partialorder %v109, 0.0004427343
    %v111 = vsel %vm110, %v108, %v105
    %v112 = vmax.f32 %v102, -100.0
    %v113 = vmax.f32 %v111, -100.0
    %v114 = vmul.f32 %v52, %v90
    %v115 = vmul.f32 %v53, %v91
    %v116 = vsub.f32 1.0, %v52
    %v117 = vsub.f32 1.0, %v53
    %v118 = vmul.f32 %v116, %v112
    %v119 = vmul.f32 %v117, %v113
    %v120 = vadd.f32 %v114, %v118
    %v121 = vadd.f32 %v115, %v119
    %v122 = vsub.f32 0.0, %v120
    %v123 = vsub.f32 0.0, %v121
    %v124 = vrot.slane %v122, 4
    %v125 = vadd.f32 %v122, %v124
    %v126 = vrot.slane %v125, 2
    %v127 = vadd.f32 %v125, %v126
    %v128 = vrot.slane %v127, 1
    %v129 = vadd.f32 %v127, %v128
    %v130 = vrot.slane %v123, 4
    %v131 = vadd.f32 %v123, %v130
    %v132 = vrot.slane %v131, 2
    %v133 = vadd.f32 %v131, %v132
    %v134 = vrot.slane %v133, 1
    %v135 = vadd.f32 %v133, %v134
    %v136 = vld [vmem:[#allocation7] sm:$0xff]
    %v137 = vld [vmem:[#allocation7 + $0x8] sm:$0xff]
    %vm138 = vcmask 1040384
    %v139 = vsel %vm138, %v61, %v79
    %v140 = vsel %vm138, %v67, %v85
    %vm141 = vcmask 1041408
    %v142 = vsel %vm141, %v139, %v129
    %v143 = vsel %vm141, %v140, %v135
    %vm144 = vcmask 1042432
    %v145 = vsel %vm144, %v142, 0.0
    %v146 = vsel %vm144, %v143, 0.0
    %v147 = vadd.f32 %v136, %v145
    %v148 = vadd.f32 %v137, %v146
    %149 = vst [vmem:[#allocation7] sm:$0xff] %v147
    %150 = vst [vmem:[#allocation7 + $0x8] sm:$0xff] %v148
    // Predicated region
    $region22: #{tpu_custom_call.1} parent=1 // pred_check
      _
    $region23: #{tpu_custom_call.1} parent=1 // pred_check_branch
      %152 = sbr.rel (0) target = $region25
    $region24: #{tpu_custom_call.1} parent=1 // pred_region
      %154 = vsyncadd [#allocation4], 0
      %s155 = sshll.u32 [#allocation7], 4
      %s156 = int_to_ptr.vmem [resolvable:$true] %s155
      %s157 = sshll.u32 %s2, 4
      %s158 = int_to_ptr.hbm [resolvable:$true] %s157
      %163 = dma.vmem_to_hbm [thread:$0]  %s156, 256, %s158, [#allocation4], 128, 128, 8
    $region25: #{tpu_custom_call.1} parent=1 // pred_fallthru
      _
    // Predicated region
    $region26: #{tpu_custom_call.1} parent=1 // pred_check
      _
    $region27: #{tpu_custom_call.1} parent=1 // pred_check_branch
      %165 = sbr.rel (0) target = $region29
    $region28: #{tpu_custom_call.1} parent=1 // pred_region
      %167 = dma.done [#allocation4], 256
    $region29: #{tpu_custom_call.1} parent=1 // pred_fallthru
      _
    %168 = vsyncpa [#allocation3], 1
    %169 = vsyncpa [#allocation6], 1
    %170 = vsyncpa [#allocation4], 1

</llo_original>
